<compile_context>
chip_gen: v6e
topology: v6e:2x2x1
jax: 0.10.0
libtpu: 0.0.40
codegen_flags: <defaults>
</compile_context>

<pallas_src>
import functools

import jax
import jax.numpy as jnp
from jax import lax
from jax.experimental import pallas as pl
from jax.experimental.pallas import tpu as pltpu


# ----------------------------------------------------------------------------
# Global sub-net (histogram -> 27 mapping coefficients), plain XLA.
# TODO(synk): globalSubNet is not defined in the source snippet; a
# deterministic 2-layer MLP producing 27 outputs per batch is substituted.
# ----------------------------------------------------------------------------
def global_subnet(histogram, params):
    B = histogram.shape[0]
    h = histogram.reshape(B, -1)
    z1 = jnp.maximum(h @ params["w1"] + params["b1"], 0.0)
    m = z1 @ params["w2"] + params["b2"]          # (B, 27), row-major (9,3)
    return m, h


# ----------------------------------------------------------------------------
# Pallas kernel: polynomial color mapping on a lane-dense layout.
#   x_ref: (1, 3, tr, S) VMEM block — component-of-triplet x rows x lanes
#   m_ref: (B, 27) SMEM  — flattened per-batch (9,3) coefficients
#   o_ref: (1, 3, tr, S) VMEM block
# ----------------------------------------------------------------------------
def _awb_map_kernel(m_ref, x_ref, o_ref, *, sub):
    b = pl.program_id(0)
    # 27 scalar coefficient reads from SMEM, once per grid step.
    coef = [[m_ref[b, 3 * k + c] for c in range(3)] for k in range(9)]

    tr = x_ref.shape[2]
    nsteps = tr // sub

    def body(i, carry):
        r = pl.multiple_of(i * sub, sub)
        x0 = x_ref[0, 0, pl.ds(r, sub), :]        # (sub, S)
        x1 = x_ref[0, 1, pl.ds(r, sub), :]
        x2 = x_ref[0, 2, pl.ds(r, sub), :]
        feats = (x0, x1, x2,
                 x0 * x0, x1 * x1, x2 * x2,
                 x0 * x1, x0 * x2, x1 * x2)
        for c in range(3):
            acc = feats[0] * coef[0][c]
            for k in range(1, 9):
                acc = acc + feats[k] * coef[k][c]
            o_ref[0, c, pl.ds(r, sub), :] = acc
        return carry

    lax.fori_loop(0, nsteps, body, 0)


def _pick_tr(R, cap):
    """Largest multiple-of-8 divisor of R that is <= cap; else full R."""
    best = 0
    for t in range(8, min(R, cap) + 1, 8):
        if R % t == 0:
            best = t
    return best if best else R


def awb_apply(x, m_flat, tr_cap=2048):
    """x: (B, C, H, W) f32; m_flat: (B, 27) f32 (row-major (9,3))."""
    B, C, H, W = x.shape
    L = C * H * W
    assert L % 3 == 0, "C*H*W must be divisible by 3"
    N = L // 3

    # Lane-dense layout: (B, 3, N) with pixels (triplet index) on the fast axis.
    xt = jnp.transpose(x.reshape(B, N, 3), (0, 2, 1))        # (B, 3, N)

    S = 128 if N % 128 == 0 else N                           # lane width
    R = N // S
    xt = xt.reshape(B, 3, R, S)

    tr = _pick_tr(R, tr_cap)                                 # sublane rows / block
    if tr % 32 == 0:
        sub = 32
    elif tr % 16 == 0:
        sub = 16
    elif tr % 8 == 0:
        sub = 8
    else:
        sub = tr

    kernel = functools.partial(_awb_map_kernel, sub=sub)
    block = (1, 3, tr, S)

    y4 = pl.pallas_call(
        kernel,
        out_shape=jax.ShapeDtypeStruct((B, 3, R, S), x.dtype),
        grid=(B, R // tr),
        in_specs=[
            pl.BlockSpec(memory_space=pltpu.MemorySpace.SMEM),   # (B, 27) coeffs
            pl.BlockSpec(block, lambda b, r: (b, 0, r, 0)),
        ],
        out_specs=pl.BlockSpec(block, lambda b, r: (b, 0, r, 0)),
        compiler_params=pltpu.CompilerParams(
            dimension_semantics=("parallel", "parallel"),
            vmem_limit_bytes=32 * 1024 * 1024,
        ),
    )(m_flat, xt)

    y = jnp.transpose(y4.reshape(B, 3, N), (0, 2, 1))        # (B, N, 3)
    return y.reshape(B, C, H, W)


# ----------------------------------------------------------------------------
# Full AWBNet_wo_R2 forward
# ----------------------------------------------------------------------------
def awbnet_wo_r2_forward(x, histogram, params):
    m, _ = global_subnet(histogram, params)                  # (B, 27)
    return awb_apply(x, m)


# ----------------------------------------------------------------------------
# Pure-JAX reference mirroring the PyTorch code path
# ----------------------------------------------------------------------------
def _reference(x, histogram, params):
    B = x.shape[0]
    h = histogram.reshape(B, -1)
    z1 = jnp.maximum(h @ params["w1"] + params["b1"], 0.0)
    m = (z1 @ params["w2"] + params["b2"]).reshape(B, 9, 3)
    xf = x.reshape(B, -1, 3)
    x0, x1, x2 = xf[..., 0:1], xf[..., 1:2], xf[..., 2:3]
    feat = jnp.concatenate(
        [xf, xf * xf, x0 * x1, x0 * x2, x1 * x2], axis=-1)   # (B, N, 9)
    y = jnp.einsum("bnk,bkc->bnc", feat, m)
    return y.reshape(x.shape)


if __name__ == "__main__":
    key = jax.random.PRNGKey(0)
    k_x, k_h, k_w1, k_b1, k_w2, k_b2 = jax.random.split(key, 6)

    B, C, H, W = 2, 3, 16, 16          # RGB image batch
    HH, HW = 16, 16                    # histogram spatial size (1 channel)
    FIN, HID = HH * HW, 64

    x = jax.random.uniform(k_x, (B, C, H, W), dtype=jnp.float32)
    histogram = jax.random.uniform(k_h, (B, 1, HH, HW), dtype=jnp.float32)

    params = {
        "w1": 0.05 * jax.random.normal(k_w1, (FIN, HID), dtype=jnp.float32),
        "b1": 0.01 * jax.random.normal(k_b1, (1, HID), dtype=jnp.float32),
        "w2": 0.05 * jax.random.normal(k_w2, (HID, 27), dtype=jnp.float32),
        "b2": 0.01 * jax.random.normal(k_b2, (1, 27), dtype=jnp.float32),
    }

    y = jax.jit(awbnet_wo_r2_forward)(x, histogram, params)
    y = jax.block_until_ready(y)

    y_ref = _reference(x, histogram, params)
    assert y.shape == x.shape
    assert jnp.allclose(y, y_ref, atol=1e-4, rtol=1e-4), "mismatch vs reference"

    print("KERNEL_OK")
</pallas_src>

<mosaic_0001>
module attributes {stable_mosaic.version = 11 : i64} {
  func.func @_awb_map_kernel(%arg0: i32, %arg1: i32, %arg2: memref<2x27xf32, #tpu.memory_space<smem>>, %arg3: memref<1x3x2x128xf32, #tpu.memory_space<vmem>>, %arg4: memref<1x3x2x128xf32, #tpu.memory_space<vmem>>) attributes {dimension_semantics = [#tpu.dimension_semantics<parallel>, #tpu.dimension_semantics<parallel>], iteration_bounds = array<i64: 2, 1>, scalar_prefetch = 0 : i64, scratch_operands = 0 : i64, tpu.core_type = #tpu.core_type<tc>, window_params = [{transform_indices = @transform_0, window_bounds = array<i64: 2, 27>}, {transform_indices = @transform_1, window_bounds = array<i64: 1, 3, 2, 128>}, {transform_indices = @transform_2, window_bounds = array<i64: 1, 3, 2, 128>}]} {
    %0 = arith.index_cast %arg0 : i32 to index
    %c0 = arith.constant 0 : index
    %1 = memref.load %arg2[%0, %c0] : memref<2x27xf32, #tpu.memory_space<smem>>
    %2 = arith.index_cast %arg0 : i32 to index
    %c1 = arith.constant 1 : index
    %3 = memref.load %arg2[%2, %c1] : memref<2x27xf32, #tpu.memory_space<smem>>
    %4 = arith.index_cast %arg0 : i32 to index
    %c2 = arith.constant 2 : index
    %5 = memref.load %arg2[%4, %c2] : memref<2x27xf32, #tpu.memory_space<smem>>
    %6 = arith.index_cast %arg0 : i32 to index
    %c3 = arith.constant 3 : index
    %7 = memref.load %arg2[%6, %c3] : memref<2x27xf32, #tpu.memory_space<smem>>
    %8 = arith.index_cast %arg0 : i32 to index
    %c4 = arith.constant 4 : index
    %9 = memref.load %arg2[%8, %c4] : memref<2x27xf32, #tpu.memory_space<smem>>
    %10 = arith.index_cast %arg0 : i32 to index
    %c5 = arith.constant 5 : index
    %11 = memref.load %arg2[%10, %c5] : memref<2x27xf32, #tpu.memory_space<smem>>
    %12 = arith.index_cast %arg0 : i32 to index
    %c6 = arith.constant 6 : index
    %13 = memref.load %arg2[%12, %c6] : memref<2x27xf32, #tpu.memory_space<smem>>
    %14 = arith.index_cast %arg0 : i32 to index
    %c7 = arith.constant 7 : index
    %15 = memref.load %arg2[%14, %c7] : memref<2x27xf32, #tpu.memory_space<smem>>
    %16 = arith.index_cast %arg0 : i32 to index
    %c8 = arith.constant 8 : index
    %17 = memref.load %arg2[%16, %c8] : memref<2x27xf32, #tpu.memory_space<smem>>
    %18 = arith.index_cast %arg0 : i32 to index
    %c9 = arith.constant 9 : index
    %19 = memref.load %arg2[%18, %c9] : memref<2x27xf32, #tpu.memory_space<smem>>
    %20 = arith.index_cast %arg0 : i32 to index
    %c10 = arith.constant 10 : index
    %21 = memref.load %arg2[%20, %c10] : memref<2x27xf32, #tpu.memory_space<smem>>
    %22 = arith.index_cast %arg0 : i32 to index
    %c11 = arith.constant 11 : index
    %23 = memref.load %arg2[%22, %c11] : memref<2x27xf32, #tpu.memory_space<smem>>
    %24 = arith.index_cast %arg0 : i32 to index
    %c12 = arith.constant 12 : index
    %25 = memref.load %arg2[%24, %c12] : memref<2x27xf32, #tpu.memory_space<smem>>
    %26 = arith.index_cast %arg0 : i32 to index
    %c13 = arith.constant 13 : index
    %27 = memref.load %arg2[%26, %c13] : memref<2x27xf32, #tpu.memory_space<smem>>
    %28 = arith.index_cast %arg0 : i32 to index
    %c14 = arith.constant 14 : index
    %29 = memref.load %arg2[%28, %c14] : memref<2x27xf32, #tpu.memory_space<smem>>
    %30 = arith.index_cast %arg0 : i32 to index
    %c15 = arith.constant 15 : index
    %31 = memref.load %arg2[%30, %c15] : memref<2x27xf32, #tpu.memory_space<smem>>
    %32 = arith.index_cast %arg0 : i32 to index
    %c16 = arith.constant 16 : index
    %33 = memref.load %arg2[%32, %c16] : memref<2x27xf32, #tpu.memory_space<smem>>
    %34 = arith.index_cast %arg0 : i32 to index
    %c17 = arith.constant 17 : index
    %35 = memref.load %arg2[%34, %c17] : memref<2x27xf32, #tpu.memory_space<smem>>
    %36 = arith.index_cast %arg0 : i32 to index
    %c18 = arith.constant 18 : index
    %37 = memref.load %arg2[%36, %c18] : memref<2x27xf32, #tpu.memory_space<smem>>
    %38 = arith.index_cast %arg0 : i32 to index
    %c19 = arith.constant 19 : index
    %39 = memref.load %arg2[%38, %c19] : memref<2x27xf32, #tpu.memory_space<smem>>
    %40 = arith.index_cast %arg0 : i32 to index
    %c20 = arith.constant 20 : index
    %41 = memref.load %arg2[%40, %c20] : memref<2x27xf32, #tpu.memory_space<smem>>
    %42 = arith.index_cast %arg0 : i32 to index
    %c21 = arith.constant 21 : index
    %43 = memref.load %arg2[%42, %c21] : memref<2x27xf32, #tpu.memory_space<smem>>
    %44 = arith.index_cast %arg0 : i32 to index
    %c22 = arith.constant 22 : index
    %45 = memref.load %arg2[%44, %c22] : memref<2x27xf32, #tpu.memory_space<smem>>
    %46 = arith.index_cast %arg0 : i32 to index
    %c23 = arith.constant 23 : index
    %47 = memref.load %arg2[%46, %c23] : memref<2x27xf32, #tpu.memory_space<smem>>
    %48 = arith.index_cast %arg0 : i32 to index
    %c24 = arith.constant 24 : index
    %49 = memref.load %arg2[%48, %c24] : memref<2x27xf32, #tpu.memory_space<smem>>
    %50 = arith.index_cast %arg0 : i32 to index
    %c25 = arith.constant 25 : index
    %51 = memref.load %arg2[%50, %c25] : memref<2x27xf32, #tpu.memory_space<smem>>
    %52 = arith.index_cast %arg0 : i32 to index
    %c26 = arith.constant 26 : index
    %53 = memref.load %arg2[%52, %c26] : memref<2x27xf32, #tpu.memory_space<smem>>
    %c0_i32 = arith.constant 0 : i32
    %c2_i32 = arith.constant 2 : i32
    %54 = arith.muli %c0_i32, %c2_i32 : i32
    %55 = tpu.assume_multiple %54, 2 : i32
    %c0_0 = arith.constant 0 : index
    %c0_1 = arith.constant 0 : index
    %56 = arith.index_cast %55 : i32 to index
    %c0_2 = arith.constant 0 : index
    %57 = vector.load %arg3[%c0_0, %c0_1, %56, %c0_2] : memref<1x3x2x128xf32, #tpu.memory_space<vmem>>, vector<1x1x2x128xf32>
    %58 = vector.shape_cast %57 : vector<1x1x2x128xf32> to vector<2x128xf32>
    %c0_3 = arith.constant 0 : index
    %c1_4 = arith.constant 1 : index
    %59 = arith.index_cast %55 : i32 to index
    %c0_5 = arith.constant 0 : index
    %60 = vector.load %arg3[%c0_3, %c1_4, %59, %c0_5] : memref<1x3x2x128xf32, #tpu.memory_space<vmem>>, vector<1x1x2x128xf32>
    %61 = vector.shape_cast %60 : vector<1x1x2x128xf32> to vector<2x128xf32>
    %c0_6 = arith.constant 0 : index
    %c2_7 = arith.constant 2 : index
    %62 = arith.index_cast %55 : i32 to index
    %c0_8 = arith.constant 0 : index
    %63 = vector.load %arg3[%c0_6, %c2_7, %62, %c0_8] : memref<1x3x2x128xf32, #tpu.memory_space<vmem>>, vector<1x1x2x128xf32>
    %64 = vector.shape_cast %63 : vector<1x1x2x128xf32> to vector<2x128xf32>
    %65 = arith.mulf %58, %58 : vector<2x128xf32>
    %66 = arith.mulf %61, %61 : vector<2x128xf32>
    %67 = arith.mulf %64, %64 : vector<2x128xf32>
    %68 = arith.mulf %58, %61 : vector<2x128xf32>
    %69 = arith.mulf %58, %64 : vector<2x128xf32>
    %70 = arith.mulf %61, %64 : vector<2x128xf32>
    %71 = vector.broadcast %1 : f32 to vector<2x128xf32>
    %72 = arith.mulf %58, %71 : vector<2x128xf32>
    %73 = vector.broadcast %7 : f32 to vector<2x128xf32>
    %74 = arith.mulf %61, %73 : vector<2x128xf32>
    %75 = arith.addf %72, %74 : vector<2x128xf32>
    %76 = vector.broadcast %13 : f32 to vector<2x128xf32>
    %77 = arith.mulf %64, %76 : vector<2x128xf32>
    %78 = arith.addf %75, %77 : vector<2x128xf32>
    %79 = vector.broadcast %19 : f32 to vector<2x128xf32>
    %80 = arith.mulf %65, %79 : vector<2x128xf32>
    %81 = arith.addf %78, %80 : vector<2x128xf32>
    %82 = vector.broadcast %25 : f32 to vector<2x128xf32>
    %83 = arith.mulf %66, %82 : vector<2x128xf32>
    %84 = arith.addf %81, %83 : vector<2x128xf32>
    %85 = vector.broadcast %31 : f32 to vector<2x128xf32>
    %86 = arith.mulf %67, %85 : vector<2x128xf32>
    %87 = arith.addf %84, %86 : vector<2x128xf32>
    %88 = vector.broadcast %37 : f32 to vector<2x128xf32>
    %89 = arith.mulf %68, %88 : vector<2x128xf32>
    %90 = arith.addf %87, %89 : vector<2x128xf32>
    %91 = vector.broadcast %43 : f32 to vector<2x128xf32>
    %92 = arith.mulf %69, %91 : vector<2x128xf32>
    %93 = arith.addf %90, %92 : vector<2x128xf32>
    %94 = vector.broadcast %49 : f32 to vector<2x128xf32>
    %95 = arith.mulf %70, %94 : vector<2x128xf32>
    %96 = arith.addf %93, %95 : vector<2x128xf32>
    %c0_9 = arith.constant 0 : index
    %c0_10 = arith.constant 0 : index
    %97 = arith.index_cast %55 : i32 to index
    %c0_11 = arith.constant 0 : index
    %98 = vector.load %arg4[%c0_9, %c0_10, %97, %c0_11] : memref<1x3x2x128xf32, #tpu.memory_space<vmem>>, vector<1x1x2x128xf32>
    %99 = vector.shape_cast %98 : vector<1x1x2x128xf32> to vector<2x128xf32>
    %100 = vector.shape_cast %96 : vector<2x128xf32> to vector<1x1x2x128xf32>
    tpu.vector_store %arg4[%c0_9, %c0_10, %97, %c0_11], %100 {strides = array<i32>} : memref<1x3x2x128xf32, #tpu.memory_space<vmem>>, vector<1x1x2x128xf32>,
    %101 = vector.broadcast %3 : f32 to vector<2x128xf32>
    %102 = arith.mulf %58, %101 : vector<2x128xf32>
    %103 = vector.broadcast %9 : f32 to vector<2x128xf32>
    %104 = arith.mulf %61, %103 : vector<2x128xf32>
    %105 = arith.addf %102, %104 : vector<2x128xf32>
    %106 = vector.broadcast %15 : f32 to vector<2x128xf32>
    %107 = arith.mulf %64, %106 : vector<2x128xf32>
    %108 = arith.addf %105, %107 : vector<2x128xf32>
    %109 = vector.broadcast %21 : f32 to vector<2x128xf32>
    %110 = arith.mulf %65, %109 : vector<2x128xf32>
    %111 = arith.addf %108, %110 : vector<2x128xf32>
    %112 = vector.broadcast %27 : f32 to vector<2x128xf32>
    %113 = arith.mulf %66, %112 : vector<2x128xf32>
    %114 = arith.addf %111, %113 : vector<2x128xf32>
    %115 = vector.broadcast %33 : f32 to vector<2x128xf32>
    %116 = arith.mulf %67, %115 : vector<2x128xf32>
    %117 = arith.addf %114, %116 : vector<2x128xf32>
    %118 = vector.broadcast %39 : f32 to vector<2x128xf32>
    %119 = arith.mulf %68, %118 : vector<2x128xf32>
    %120 = arith.addf %117, %119 : vector<2x128xf32>
    %121 = vector.broadcast %45 : f32 to vector<2x128xf32>
    %122 = arith.mulf %69, %121 : vector<2x128xf32>
    %123 = arith.addf %120, %122 : vector<2x128xf32>
    %124 = vector.broadcast %51 : f32 to vector<2x128xf32>
    %125 = arith.mulf %70, %124 : vector<2x128xf32>
    %126 = arith.addf %123, %125 : vector<2x128xf32>
    %c0_12 = arith.constant 0 : index
    %c1_13 = arith.constant 1 : index
    %127 = arith.index_cast %55 : i32 to index
    %c0_14 = arith.constant 0 : index
    %128 = vector.load %arg4[%c0_12, %c1_13, %127, %c0_14] : memref<1x3x2x128xf32, #tpu.memory_space<vmem>>, vector<1x1x2x128xf32>
    %129 = vector.shape_cast %128 : vector<1x1x2x128xf32> to vector<2x128xf32>
    %130 = vector.shape_cast %126 : vector<2x128xf32> to vector<1x1x2x128xf32>
    tpu.vector_store %arg4[%c0_12, %c1_13, %127, %c0_14], %130 {strides = array<i32>} : memref<1x3x2x128xf32, #tpu.memory_space<vmem>>, vector<1x1x2x128xf32>,
    %131 = vector.broadcast %5 : f32 to vector<2x128xf32>
    %132 = arith.mulf %58, %131 : vector<2x128xf32>
    %133 = vector.broadcast %11 : f32 to vector<2x128xf32>
    %134 = arith.mulf %61, %133 : vector<2x128xf32>
    %135 = arith.addf %132, %134 : vector<2x128xf32>
    %136 = vector.broadcast %17 : f32 to vector<2x128xf32>
    %137 = arith.mulf %64, %136 : vector<2x128xf32>
    %138 = arith.addf %135, %137 : vector<2x128xf32>
    %139 = vector.broadcast %23 : f32 to vector<2x128xf32>
    %140 = arith.mulf %65, %139 : vector<2x128xf32>
    %141 = arith.addf %138, %140 : vector<2x128xf32>
    %142 = vector.broadcast %29 : f32 to vector<2x128xf32>
    %143 = arith.mulf %66, %142 : vector<2x128xf32>
    %144 = arith.addf %141, %143 : vector<2x128xf32>
    %145 = vector.broadcast %35 : f32 to vector<2x128xf32>
    %146 = arith.mulf %67, %145 : vector<2x128xf32>
    %147 = arith.addf %144, %146 : vector<2x128xf32>
    %148 = vector.broadcast %41 : f32 to vector<2x128xf32>
    %149 = arith.mulf %68, %148 : vector<2x128xf32>
    %150 = arith.addf %147, %149 : vector<2x128xf32>
    %151 = vector.broadcast %47 : f32 to vector<2x128xf32>
    %152 = arith.mulf %69, %151 : vector<2x128xf32>
    %153 = arith.addf %150, %152 : vector<2x128xf32>
    %154 = vector.broadcast %53 : f32 to vector<2x128xf32>
    %155 = arith.mulf %70, %154 : vector<2x128xf32>
    %156 = arith.addf %153, %155 : vector<2x128xf32>
    %c0_15 = arith.constant 0 : index
    %c2_16 = arith.constant 2 : index
    %157 = arith.index_cast %55 : i32 to index
    %c0_17 = arith.constant 0 : index
    %158 = vector.load %arg4[%c0_15, %c2_16, %157, %c0_17] : memref<1x3x2x128xf32, #tpu.memory_space<vmem>>, vector<1x1x2x128xf32>
    %159 = vector.shape_cast %158 : vector<1x1x2x128xf32> to vector<2x128xf32>
    %160 = vector.shape_cast %156 : vector<2x128xf32> to vector<1x1x2x128xf32>
    tpu.vector_store %arg4[%c0_15, %c2_16, %157, %c0_17], %160 {strides = array<i32>} : memref<1x3x2x128xf32, #tpu.memory_space<vmem>>, vector<1x1x2x128xf32>,
    %c1_i32 = arith.constant 1 : i32
    return
  }
  func.func @transform_0(%arg0: i32, %arg1: i32) -> (i32, i32) {
    %c0_i32 = arith.constant 0 : i32
    %c0_i32_0 = arith.constant 0 : i32
    %c0_i32_1 = arith.constant 0 : i32
    return %c0_i32, %c0_i32_0 : i32, i32
  }
  func.func @transform_1(%arg0: i32, %arg1: i32) -> (i32, i32, i32, i32) {
    %c0_i32 = arith.constant 0 : i32
    %c0_i32_0 = arith.constant 0 : i32
    %c0_i32_1 = arith.constant 0 : i32
    return %arg0, %c0_i32, %arg1, %c0_i32_0 : i32, i32, i32, i32
  }
  func.func @transform_2(%arg0: i32, %arg1: i32) -> (i32, i32, i32, i32) {
    %c0_i32 = arith.constant 0 : i32
    %c0_i32_0 = arith.constant 0 : i32
    %c0_i32_1 = arith.constant 0 : i32
    return %arg0, %c0_i32, %arg1, %c0_i32_0 : i32, i32, i32, i32
  }
}

</mosaic_0001>

<llo_original>
// kernel: awbnet_wo_r2_forward.1
$region0: #{awbnet_wo_r2_forward.1}
  #allocation0 [shape = 'u32[]', space=smem, size = 0x4, offset = 0x4, fixed_abs, tag = 'smem constant byte address 0x4 - core index']
  #allocation1 [shape = 'u32[144,128]{1,0:T(1,128)}', space=vmem, size = 0x12000, scoped, tag = 'internal scratch']
  %s0 = inlined_call_operand.vmem [shape: f32[2,27], index: 0, kind: input, shape index: {}]
  %s1 = inlined_call_operand.vmem [shape: f32[2,3,2,128], index: 1, kind: input, shape index: {}]
  %s2 = inlined_call_operand.vmem [shape: f32[2,3,2,128], index: 2, kind: output, shape index: {}]
  %s3 = sld [smem:[#allocation0]]
  $region45: #{awbnet_wo_r2_forward.1} parent=0
    _
  %s5 = ssub.s32 1, %s3
  %s6 = scalar_select 0, %s5, %s3
  $region1: #{awbnet_wo_r2_forward.1} parent=0
    #allocation2 [shape = 'u8[1024]{0}', space=smem, size = 0x400, scoped, tag = 'input window, operand 0, single buffered']
    #allocation3 [shape = 's32[2]{0}', space=sflag, size = 0x8, scoped, tag = 'scoped memory for awbnet_wo_r2_forward.1']
    %7 = vsyncpa [#allocation3], 0
    loop: start=0, step=1, limit=4
    $region2: #{awbnet_wo_r2_forward.1} parent=1 // loop_pre_header
      _
    $region3: #{awbnet_wo_r2_forward.1} parent=1 // loop_header
      %s9 = sphi 0, %s13
      %p10 = scmp.ge.s32.totalorder %s9, 4
      %s16 = sphi 0, %s28
      %s17 = sphi 0, %s24
      %s18 = sphi 0, %s16
      %s19 = sphi 0, %s17
      %s20 = sphi 0, %s18
      %s21 = sphi 0, %s19
      %s29 = sphi 0, %s29
      %s31 = sphi 0, %s29
      %s32 = sphi 0, %s31
      %s46 = sphi 0, %s32
      %s54 = sphi 0, %s56
      %s57 = sphi 0, %s54
      %s58 = sphi 0, %s57
      %s74 = sphi 0, %s58
      %s82 = sphi 0, %s84
      %s85 = sphi 0, %s82
      %s86 = sphi 0, %s85
      %s102 = sphi 0, %s86
    $region4: #{awbnet_wo_r2_forward.1} parent=1 // loop_header_branch
      %12 = sbr.rel (%p10) target = $region8
    $region5: #{awbnet_wo_r2_forward.1} parent=1 // loop_body
      %s14 = ssub.s32 %s9, 1
      %s15 = ssub.s32 %s9, 2
      %s22 = sadd.s32 1, %s17
      %p23 = scmp.ge.s32.totalorder %s22, 1
      %s24 = scalar_select %p23, 0, %s22
      %s25 = sadd.s32 1, %s16
      %s26 = scalar_select %p23, %s25, %s16
      %p27 = scmp.ge.s32.totalorder %s26, 2
      %s28 = scalar_select %p27, 0, %s26
      %s30 = sadd.s32 %s29, 1
      %p33 = scmp.eq.s32.totalorder %s9, 1
      %p34 = scmp.ne.s32.totalorder %s29, %s31
      %p35 = scmp.eq.s32.totalorder %s9, 0
      %p36 = por %p34, %p35
      %p37 = scmp.ne.s32.totalorder %s29, %s31
      %p38 = scmp.eq.s32.totalorder %s14, 1
      %p39 = por %p37, %p38
      %p40 = scmp.ne.s32.totalorder %s31, %s32
      %p41 = scmp.eq.s32.totalorder %s14, 0
      %p42 = por %p40, %p41
      %p43 = scmp.ne.s32.totalorder %s31, %s32
      %p44 = scmp.eq.s32.totalorder %s15, 1
      %p45 = por %p43, %p44
      %p47 = scmp.ne.s32.totalorder %s32, %s46
      %p48 = scmp.eq.s32.totalorder %s15, 0
      %p49 = por %p47, %p48
      %s50 = ssub.s32 %s16, %s28
      %s51 = ssub.s32 %s17, %s24
      %s52 = sor.u32 %s50, %s51
      %p53 = scmp.eq.s32.totalorder %s52, 0
      %s55 = sadd.s32 %s54, 1
      %s56 = scalar_select %p53, %s54, %s55
      %p59 = pneg %p53
      %p60 = scmp.eq.s32.totalorder %s9, 1
      %p61 = por %p59, %p60
      %p62 = scmp.ne.s32.totalorder %s54, %s57
      %p63 = scmp.eq.s32.totalorder %s9, 0
      %p64 = por %p62, %p63
      %p65 = scmp.ne.s32.totalorder %s54, %s57
      %p66 = scmp.eq.s32.totalorder %s14, 1
      %p67 = por %p65, %p66
      %p68 = scmp.ne.s32.totalorder %s57, %s58
      %p69 = scmp.eq.s32.totalorder %s14, 0
      %p70 = por %p68, %p69
      %p71 = scmp.ne.s32.totalorder %s57, %s58
      %p72 = scmp.eq.s32.totalorder %s15, 1
      %p73 = por %p71, %p72
      %p75 = scmp.ne.s32.totalorder %s58, %s74
      %p76 = scmp.eq.s32.totalorder %s15, 0
      %p77 = por %p75, %p76
      %s78 = ssub.s32 %s16, %s28
      %s79 = ssub.s32 %s17, %s24
      %s80 = sor.u32 %s78, %s79
      %p81 = scmp.eq.s32.totalorder %s80, 0
      %s83 = sadd.s32 %s82, 1
      %s84 = scalar_select %p81, %s82, %s83
      %p87 = pneg %p81
      %p88 = scmp.eq.s32.totalorder %s9, 1
      %p89 = por %p87, %p88
      %p90 = scmp.ne.s32.totalorder %s82, %s85
      %p91 = scmp.eq.s32.totalorder %s9, 0
      %p92 = por %p90, %p91
      %p93 = scmp.ne.s32.totalorder %s82, %s85
      %p94 = scmp.eq.s32.totalorder %s14, 1
      %p95 = por %p93, %p94
      %p96 = scmp.ne.s32.totalorder %s85, %s86
      %p97 = scmp.eq.s32.totalorder %s14, 0
      %p98 = por %p96, %p97
      %p99 = scmp.ne.s32.totalorder %s85, %s86
      %p100 = scmp.eq.s32.totalorder %s15, 1
      %p101 = por %p99, %p100
      %p103 = scmp.ne.s32.totalorder %s86, %s102
      %p104 = scmp.eq.s32.totalorder %s15, 0
      %p105 = por %p103, %p104
      %p106 = scmp.le.s32.totalorder 1, %s9
      %p107 = scmp.lt.s32.totalorder %s9, 3
      %p108 = pnand %p106, %p107
      %p109 = pneg %p108
      // Predicated region
      $region9: #{awbnet_wo_r2_forward.1} parent=5 // pred_check
        _
      $region10: #{awbnet_wo_r2_forward.1} parent=5 // pred_check_branch
        %111 = sbr.rel (%p108) target = $region12
      $region11: #{awbnet_wo_r2_forward.1} parent=5 // pred_region
        %s112 = ssub.s32 %s9, 1
        // Predicated region
        $region13: #{awbnet_wo_r2_forward.1} parent=11 // pred_check
          %p113 = pneg %p42
        $region14: #{awbnet_wo_r2_forward.1} parent=11 // pred_check_branch
          %115 = sbr.rel (%p113) target = $region16
        $region15: #{awbnet_wo_r2_forward.1} parent=11 // pred_region
          %s117 = ssub.s32 32, 32
          %118 = vsyncadd [#allocation3], %s117
          %s120 = sshll.u32 %s0, 4
          %s121 = int_to_ptr.vmem [resolvable:$true] %s120
          %123 = dma.vmem_to_smem %s121, 32, [#allocation2], [#allocation3]
        $region16: #{awbnet_wo_r2_forward.1} parent=11 // pred_fallthru
          _
      $region12: #{awbnet_wo_r2_forward.1} parent=5 // pred_fallthru
        _
      %p124 = scmp.lt.s32.totalorder %s9, 2
      // Predicated region
      $region17: #{awbnet_wo_r2_forward.1} parent=5 // pred_check
        %p125 = pneg %p124
      $region18: #{awbnet_wo_r2_forward.1} parent=5 // pred_check_branch
        %127 = sbr.rel (%p125) target = $region20
      $region19: #{awbnet_wo_r2_forward.1} parent=5 // pred_region
        // Predicated region
        $region21: #{awbnet_wo_r2_forward.1} parent=19 // pred_check
          %p128 = pneg %p64
        $region22: #{awbnet_wo_r2_forward.1} parent=19 // pred_check_branch
          %130 = sbr.rel (%p128) target = $region24
        $region23: #{awbnet_wo_r2_forward.1} parent=19 // pred_region
          %p131 = scmp.lt.s32.totalorder %s16, 1
          %s132 = scalar_select %p131, %s16, 1
          %p133 = scmp.lt.s32.totalorder %s17, 0
          %s134 = scalar_select %p133, %s17, 0
          %s135 = smul.addr %s132, 3
          %s136 = sadd.s32 %s134, %s135
          %s137 = smul.addr %s136, 2
          %s138 = scalar_lea.vmem %s1, %s137
        $region24: #{awbnet_wo_r2_forward.1} parent=19 // pred_fallthru
          _
      $region20: #{awbnet_wo_r2_forward.1} parent=5 // pred_fallthru
        _
      %p139 = scmp.le.s32.totalorder 1, %s9
      %p140 = scmp.lt.s32.totalorder %s9, 3
      %p141 = pnand %p139, %p140
      %p142 = pneg %p141
      // Predicated region
      $region25: #{awbnet_wo_r2_forward.1} parent=5 // pred_check
        _
      $region26: #{awbnet_wo_r2_forward.1} parent=5 // pred_check_branch
        %144 = sbr.rel (%p141) target = $region28
      $region27: #{awbnet_wo_r2_forward.1} parent=5 // pred_region
        %s145 = ssub.s32 %s9, 1
        // Predicated region
        $region29: #{awbnet_wo_r2_forward.1} parent=27 // pred_check
          %p146 = pneg %p42
        $region30: #{awbnet_wo_r2_forward.1} parent=27 // pred_check_branch
          %148 = sbr.rel (%p146) target = $region32
        $region31: #{awbnet_wo_r2_forward.1} parent=27 // pred_region
          %149 = dma.done [#allocation3], 32
        $region32: #{awbnet_wo_r2_forward.1} parent=27 // pred_fallthru
          _
        %150 = sfence
        %p151 = pneg %p42
        %p152 = pneg %p39
        %p153 = scmp.lt.s32.totalorder %s18, 1
        %s154 = scalar_select %p153, %s18, 1
        %p155 = scmp.lt.s32.totalorder %s19, 0
        %s156 = scalar_select %p155, %s19, 0
        %s157 = smul.addr %s154, 3
        %s158 = sadd.s32 %s156, %s157
        %s159 = smul.addr %s158, 2
        %s160 = scalar_lea.vmem %s1, %s159
        %p161 = pneg %p70
        %p162 = pneg %p67
        %p163 = pneg %p98
        %p164 = pneg %p95
        %p165 = scmp.lt.s32.totalorder %s18, 1
        %s166 = scalar_select %p165, %s18, 1
        %p167 = scmp.lt.s32.totalorder %s19, 0
        %s168 = scalar_select %p167, %s19, 0
        %s169 = smul.addr %s166, 3
        %s170 = sadd.s32 %s168, %s169
        %s171 = smul.addr %s170, 2
        %s172 = scalar_lea.vmem %s2, %s171
        %p173 = scmp.lt.s32.totalorder %s18, 1
        %s174 = scalar_select %p173, %s18, 1
        %p175 = scmp.lt.s32.totalorder %s19, 0
        %s176 = scalar_select %p175, %s19, 0
        %s177 = smul.addr %s174, 3
        %s178 = sadd.s32 %s176, %s177
        %s179 = smul.addr %s178, 2
        %s180 = scalar_lea.vmem %s1, %s179
        %p181 = scmp.lt.s32.totalorder %s18, 1
        %s182 = scalar_select %p181, %s18, 1
        %p183 = scmp.lt.s32.totalorder %s19, 0
        %s184 = scalar_select %p183, %s19, 0
        %s185 = smul.addr %s182, 3
        %s186 = sadd.s32 %s184, %s185
        %s187 = smul.addr %s186, 2
        %s188 = scalar_lea.vmem %s2, %s187
        %s189 = smul.u32 %s18, 128
        %s190 = sld [smem:[#allocation2 + %s189]]
        %s191 = sadd.s32 %s189, 1
        %s192 = sld [smem:[#allocation2 + %s191]]
        %s193 = sadd.s32 %s189, 2
        %s194 = sld [smem:[#allocation2 + %s193]]
        %s195 = sadd.s32 %s189, 3
        %s196 = sld [smem:[#allocation2 + %s195]]
        %s197 = sadd.s32 %s189, 4
        %s198 = sld [smem:[#allocation2 + %s197]]
        %s199 = sadd.s32 %s189, 5
        %s200 = sld [smem:[#allocation2 + %s199]]
        %s201 = sadd.s32 %s189, 6
        %s202 = sld [smem:[#allocation2 + %s201]]
        %s203 = sadd.s32 %s189, 7
        %s204 = sld [smem:[#allocation2 + %s203]]
        %s205 = sadd.s32 %s189, 8
        %s206 = sld [smem:[#allocation2 + %s205]]
        %s207 = sadd.s32 %s189, 9
        %s208 = sld [smem:[#allocation2 + %s207]]
        %s209 = sadd.s32 %s189, 10
        %s210 = sld [smem:[#allocation2 + %s209]]
        %s211 = sadd.s32 %s189, 11
        %s212 = sld [smem:[#allocation2 + %s211]]
        %s213 = sadd.s32 %s189, 12
        %s214 = sld [smem:[#allocation2 + %s213]]
        %s215 = sadd.s32 %s189, 13
        %s216 = sld [smem:[#allocation2 + %s215]]
        %s217 = sadd.s32 %s189, 14
        %s218 = sld [smem:[#allocation2 + %s217]]
        %s219 = sadd.s32 %s189, 15
        %s220 = sld [smem:[#allocation2 + %s219]]
        %s221 = sadd.s32 %s189, 16
        %s222 = sld [smem:[#allocation2 + %s221]]
        %s223 = sadd.s32 %s189, 17
        %s224 = sld [smem:[#allocation2 + %s223]]
        %s225 = sadd.s32 %s189, 18
        %s226 = sld [smem:[#allocation2 + %s225]]
        %s227 = sadd.s32 %s189, 19
        %s228 = sld [smem:[#allocation2 + %s227]]
        %s229 = sadd.s32 %s189, 20
        %s230 = sld [smem:[#allocation2 + %s229]]
        %s231 = sadd.s32 %s189, 21
        %s232 = sld [smem:[#allocation2 + %s231]]
        %s233 = sadd.s32 %s189, 22
        %s234 = sld [smem:[#allocation2 + %s233]]
        %s235 = sadd.s32 %s189, 23
        %s236 = sld [smem:[#allocation2 + %s235]]
        %s237 = sadd.s32 %s189, 24
        %s238 = sld [smem:[#allocation2 + %s237]]
        %s239 = sadd.s32 %s189, 25
        %s240 = sld [smem:[#allocation2 + %s239]]
        %s241 = sadd.s32 %s189, 26
        %s242 = sld [smem:[#allocation2 + %s241]]
        %v243 = vld [vmem:[%s180] sm:$0x3]
        %s244 = sadd.s32 0, 2
        %s245 = scalar_lea.vmem %s180, %s244
        %v246 = vld [vmem:[%s245] sm:$0x3]
        %s247 = sadd.s32 0, 4
        %s248 = scalar_lea.vmem %s180, %s247
        %v249 = vld [vmem:[%s248] sm:$0x3]
        %v250 = vmul.f32 %v243, %v243
        %v251 = vmul.f32 %v246, %v246
        %v252 = vmul.f32 %v249, %v249
        %v253 = vmul.f32 %v243, %v246
        %v254 = vmul.f32 %v243, %v249
        %v255 = vmul.f32 %v246, %v249
        %v256 = vstv %s190
        %v257 = vmul.f32 %v243, %v256
        %v258 = vstv %s196
        %v259 = vmul.f32 %v246, %v258
        %v260 = vadd.f32 %v257, %v259
        %v261 = vstv %s202
        %v262 = vmul.f32 %v249, %v261
        %v263 = vadd.f32 %v260, %v262
        %v264 = vstv %s208
        %v265 = vmul.f32 %v250, %v264
        %v266 = vadd.f32 %v263, %v265
        %v267 = vstv %s214
        %v268 = vmul.f32 %v251, %v267
        %v269 = vadd.f32 %v266, %v268
        %v270 = vstv %s220
        %v271 = vmul.f32 %v252, %v270
        %v272 = vadd.f32 %v269, %v271
        %v273 = vstv %s226
        %v274 = vmul.f32 %v253, %v273
        %v275 = vadd.f32 %v272, %v274
        %v276 = vstv %s232
        %v277 = vmul.f32 %v254, %v276
        %v278 = vadd.f32 %v275, %v277
        %v279 = vstv %s238
        %v280 = vmul.f32 %v255, %v279
        %v281 = vadd.f32 %v278, %v280
        %282 = vst [vmem:[%s188] sm:$0x3] %v281
        %v283 = vstv %s192
        %v284 = vmul.f32 %v243, %v283
        %v285 = vstv %s198
        %v286 = vmul.f32 %v246, %v285
        %v287 = vadd.f32 %v284, %v286
        %v288 = vstv %s204
        %v289 = vmul.f32 %v249, %v288
        %v290 = vadd.f32 %v287, %v289
        %v291 = vstv %s210
        %v292 = vmul.f32 %v250, %v291
        %v293 = vadd.f32 %v290, %v292
        %v294 = vstv %s216
        %v295 = vmul.f32 %v251, %v294
        %v296 = vadd.f32 %v293, %v295
        %v297 = vstv %s222
        %v298 = vmul.f32 %v252, %v297
        %v299 = vadd.f32 %v296, %v298
        %v300 = vstv %s228
        %v301 = vmul.f32 %v253, %v300
        %v302 = vadd.f32 %v299, %v301
        %v303 = vstv %s234
        %v304 = vmul.f32 %v254, %v303
        %v305 = vadd.f32 %v302, %v304
        %v306 = vstv %s240
        %v307 = vmul.f32 %v255, %v306
        %v308 = vadd.f32 %v305, %v307
        %s309 = scalar_lea.vmem %s188, %s244
        %310 = vst [vmem:[%s309] sm:$0x3] %v308
        %v311 = vstv %s194
        %v312 = vmul.f32 %v243, %v311
        %v313 = vstv %s200
        %v314 = vmul.f32 %v246, %v313
        %v315 = vadd.f32 %v312, %v314
        %v316 = vstv %s206
        %v317 = vmul.f32 %v249, %v316
        %v318 = vadd.f32 %v315, %v317
        %v319 = vstv %s212
        %v320 = vmul.f32 %v250, %v319
        %v321 = vadd.f32 %v318, %v320
        %v322 = vstv %s218
        %v323 = vmul.f32 %v251, %v322
        %v324 = vadd.f32 %v321, %v323
        %v325 = vstv %s224
        %v326 = vmul.f32 %v252, %v325
        %v327 = vadd.f32 %v324, %v326
        %v328 = vstv %s230
        %v329 = vmul.f32 %v253, %v328
        %v330 = vadd.f32 %v327, %v329
        %v331 = vstv %s236
        %v332 = vmul.f32 %v254, %v331
        %v333 = vadd.f32 %v330, %v332
        %v334 = vstv %s242
        %v335 = vmul.f32 %v255, %v334
        %v336 = vadd.f32 %v333, %v335
        %s337 = scalar_lea.vmem %s188, %s247
        %338 = vst [vmem:[%s337] sm:$0x3] %v336
        %p339 = scmp.lt.s32.totalorder %s18, 1
        %s340 = scalar_select %p339, %s18, 1
        %p341 = scmp.lt.s32.totalorder %s19, 0
        %s342 = scalar_select %p341, %s19, 0
        %s343 = smul.addr %s340, 3
        %s344 = sadd.s32 %s342, %s343
        %s345 = smul.addr %s344, 2
        %s346 = scalar_lea.vmem %s2, %s345
        // Predicated region
        $region33: #{awbnet_wo_r2_forward.1} parent=27 // pred_check
          %p347 = pneg %p95
        $region34: #{awbnet_wo_r2_forward.1} parent=27 // pred_check_branch
          %349 = sbr.rel (%p347) target = $region36
        $region35: #{awbnet_wo_r2_forward.1} parent=27 // pred_region
          _
        $region36: #{awbnet_wo_r2_forward.1} parent=27 // pred_fallthru
          _
      $region28: #{awbnet_wo_r2_forward.1} parent=5 // pred_fallthru
        _
      %p350 = scmp.le.s32.totalorder 2, %s9
      // Predicated region
      $region37: #{awbnet_wo_r2_forward.1} parent=5 // pred_check
        %p351 = pneg %p350
      $region38: #{awbnet_wo_r2_forward.1} parent=5 // pred_check_branch
        %353 = sbr.rel (%p351) target = $region40
      $region39: #{awbnet_wo_r2_forward.1} parent=5 // pred_region
        %s354 = ssub.s32 %s9, 2
        // Predicated region
        $region41: #{awbnet_wo_r2_forward.1} parent=39 // pred_check
          %p355 = pneg %p101
        $region42: #{awbnet_wo_r2_forward.1} parent=39 // pred_check_branch
          %357 = sbr.rel (%p355) target = $region44
        $region43: #{awbnet_wo_r2_forward.1} parent=39 // pred_region
          %p358 = scmp.lt.s32.totalorder %s20, 1
          %s359 = scalar_select %p358, %s20, 1
          %p360 = scmp.lt.s32.totalorder %s21, 0
          %s361 = scalar_select %p360, %s21, 0
          %s362 = smul.addr %s359, 3
          %s363 = sadd.s32 %s361, %s362
          %s364 = smul.addr %s363, 2
          %s365 = scalar_lea.vmem %s2, %s364
        $region44: #{awbnet_wo_r2_forward.1} parent=39 // pred_fallthru
          _
      $region40: #{awbnet_wo_r2_forward.1} parent=5 // pred_fallthru
        _
    $region6: #{awbnet_wo_r2_forward.1} parent=1 // loop_footer
      %s13 = sadd.s32 1, %s9
    $region7: #{awbnet_wo_r2_forward.1} parent=1 // loop_footer_branch
      %8 = sbr.rel target = $region3
    $region8: #{awbnet_wo_r2_forward.1} parent=1 // loop_exit
      _
    %366 = vsyncpa [#allocation3], 1
    %s367 = scalar_lea.sflag [#allocation3], 1
    %368 = vsyncpa %s367, 1

</llo_original>
